<compile_context>
chip_gen: v6e
topology: v6e:2x2x1
jax: 0.10.0
libtpu: 0.0.40
codegen_flags: <defaults>
</compile_context>

<pallas_src>
import functools

import jax
import jax.numpy as jnp
from jax.experimental import pallas as pl
from jax.experimental.pallas import tpu as pltpu


def _ce_kernel(x_ref, t_ref, w_ref, out_ref, *, hw, tile):
    """One (batch-block, pixel-block) grid step.

    x_ref  : (Bt, C, T)    logits block (pixels lane-dense, channels on sublanes)
    t_ref  : (Bt, 1, T)    integer targets block (native dtype)
    w_ref  : (1, C, 1)     per-class weights (f32)
    out_ref: (1, 1, 1, 128) packed partial sums: lane0 = sum w*nll, lane1 = sum w
    """
    p = pl.program_id(1)

    x = x_ref[...].astype(jnp.float32)          # (Bt, C, T)
    t = t_ref[...].astype(jnp.int32)            # (Bt, 1, T)
    w = w_ref[...]                              # (1, C, 1)

    Bt, C, T = x.shape

    # Numerically stable log-softmax over the channel (sublane) axis.
    m = jnp.max(x, axis=1, keepdims=True)                               # (Bt,1,T)
    lse = jnp.log(jnp.sum(jnp.exp(x - m), axis=1, keepdims=True)) + m   # (Bt,1,T)

    # One-hot select of the target logit and its class weight.
    cls = jax.lax.broadcasted_iota(jnp.int32, (Bt, C, T), 1)
    onehot = cls == t                                                   # (Bt,C,T)
    x_t = jnp.sum(jnp.where(onehot, x, 0.0), axis=1, keepdims=True)     # (Bt,1,T)
    w_pix = jnp.sum(jnp.where(onehot, w, 0.0), axis=1, keepdims=True)   # (Bt,1,T)

    nll = lse - x_t                                                     # (Bt,1,T)

    # Ragged-tail validity mask, applied only via the final selects so that
    # stale-VMEM garbage in out-of-range lanes can never propagate.
    lane = jax.lax.broadcasted_iota(jnp.int32, (Bt, 1, T), 2)
    valid = (p * tile + lane) < hw

    ws = jnp.sum(jnp.where(valid, nll * w_pix, 0.0))   # weighted loss, this block
    wt = jnp.sum(jnp.where(valid, w_pix, 0.0))         # weight normalizer

    # Pack both partial sums into a single lane-dense 128-wide row.
    lane128 = jax.lax.broadcasted_iota(jnp.int32, (1, 128), 1)
    packed = jnp.where(lane128 == 0, ws, jnp.where(lane128 == 1, wt, 0.0))
    out_ref[...] = packed.reshape(out_ref.shape).astype(jnp.float32)


def cross_entropy_loss(logits, targets, class_weights=None,
                       vmem_block_budget_bytes=20 * 1024 * 1024):
    """Mean (optionally class-weighted) cross entropy for NCHW logits.

    logits : (B, C, H, W) float (f32 or bf16)
    targets: (B, 1, H, W) or (B, H, W) integer class indices
    """
    B, C, H, W = logits.shape
    HW = H * W

    # Free reshapes -- no HBM copies, no transpose.
    x = logits.reshape(B, C, HW)
    if jnp.issubdtype(targets.dtype, jnp.integer) and jnp.dtype(targets.dtype).itemsize <= 4:
        t = targets.reshape(B, 1, HW)              # keep native (possibly narrow) dtype
    else:
        t = targets.reshape(B, 1, HW).astype(jnp.int32)

    if class_weights is None:
        w = jnp.ones((1, C, 1), jnp.float32)
    else:
        w = jnp.asarray(class_weights, jnp.float32).reshape(1, C, 1)

    # ---- tile selection: byte-budgeted, sublane-padding-aware VMEM sizing ----
    x_item = jnp.dtype(x.dtype).itemsize
    sublane = {4: 8, 2: 16, 1: 32}.get(x_item, 8)
    c_pad = -(-C // sublane) * sublane
    # Double-buffered VMEM bytes per pixel: padded logits column + the target
    # row (which pads to 8 int32 sublanes regardless of its HBM dtype).
    vmem_per_pix = 2 * (c_pad * x_item + 8 * 4)
    max_pix_per_step = max(128, (vmem_block_budget_bytes // vmem_per_pix) // 128 * 128)

    if HW >= max_pix_per_step:
        # Large images: one batch element per step, tile the pixel axis.
        bt = 1
        tile = max_pix_per_step
        if B == 1:
            # Keep >= 2 pixel blocks so v7x megacore has two steps to split.
            half = (((HW + 1) // 2 + 127) // 128) * 128
            tile = max(128, min(tile, half))
        tile = min(tile, HW)
    else:
        # Small images: whole pixel axis per step, block over the batch axis so
        # each step still moves a useful number of bytes.
        tile = HW
        bt = max(1, min(B, max_pix_per_step // max(HW, 1)))
        if B >= 2:
            bt = min(bt, B // 2)       # leave >= 2 steps for megacore balance
        while B % bt:
            bt -= 1

    n_blocks = pl.cdiv(HW, tile)
    n_bblocks = B // bt

    footprint = bt * tile * vmem_per_pix + (1 << 20)   # + weights/output slack
    vmem_limit = int(min(max(footprint + (4 << 20), 24 << 20), 48 << 20))

    kernel = functools.partial(_ce_kernel, hw=HW, tile=tile)

    partial = pl.pallas_call(
        kernel,
        out_shape=jax.ShapeDtypeStruct((n_bblocks, n_blocks, 1, 128), jnp.float32),
        grid_spec=pltpu.PrefetchScalarGridSpec(
            num_scalar_prefetch=0,
            grid=(n_bblocks, n_blocks),
            in_specs=[
                pl.BlockSpec((bt, C, tile), lambda b, p: (b, 0, p)),
                pl.BlockSpec((bt, 1, tile), lambda b, p: (b, 0, p)),
                pl.BlockSpec((1, C, 1), lambda b, p: (0, 0, 0)),
            ],
            out_specs=pl.BlockSpec((1, 1, 1, 128), lambda b, p: (b, p, 0, 0)),
        ),
        compiler_params=pltpu.CompilerParams(
            dimension_semantics=("parallel", "parallel"),
            vmem_limit_bytes=vmem_limit),
    )(x, t, w)

    num = jnp.sum(partial[:, :, 0, 0])
    den = jnp.sum(partial[:, :, 0, 1])
    return num / den


def _reference_ce(logits, targets, class_weights=None):
    """Pure-JAX reference matching nn.CrossEntropyLoss semantics."""
    B, C, H, W = logits.shape
    t = targets.reshape(B, H, W).astype(jnp.int32)
    x = logits.astype(jnp.float32)
    lse = jax.nn.logsumexp(x, axis=1)                                 # (B,H,W)
    x_t = jnp.take_along_axis(x, t[:, None], axis=1)[:, 0]            # (B,H,W)
    nll = lse - x_t
    if class_weights is None:
        return jnp.mean(nll)
    w = jnp.asarray(class_weights, jnp.float32)[t]
    return jnp.sum(nll * w) / jnp.sum(w)


if __name__ == "__main__":
    key = jax.random.PRNGKey(0)
    k1, k2 = jax.random.split(key)

    B, C, H, W = 2, 4, 16, 16
    class_weights = [1.0, 2.0, 0.5, 1.5]

    logits = jax.random.normal(k1, (B, C, H, W), dtype=jnp.float32)
    targets = jax.random.randint(k2, (B, 1, H, W), 0, C, dtype=jnp.int32)

    # Weighted path.
    loss = cross_entropy_loss(logits, targets, class_weights=class_weights)
    jax.block_until_ready(loss)
    ref = _reference_ce(logits, targets, class_weights=class_weights)
    assert loss.shape == ()
    assert bool(jnp.isfinite(loss))
    assert bool(jnp.allclose(loss, ref, rtol=1e-4, atol=1e-5)), (loss, ref)

    # Unweighted (plain mean) path.
    loss_u = cross_entropy_loss(logits, targets)
    jax.block_until_ready(loss_u)
    ref_u = _reference_ce(logits, targets)
    assert bool(jnp.allclose(loss_u, ref_u, rtol=1e-4, atol=1e-5)), (loss_u, ref_u)

    print("KERNEL_OK")
</pallas_src>

<mosaic_0001>
module attributes {stable_mosaic.version = 11 : i64} {
  func.func @_ce_kernel(%arg0: i32, %arg1: i32, %arg2: memref<1x4x256xf32, #tpu.memory_space<vmem>>, %arg3: memref<1x1x256xi32, #tpu.memory_space<vmem>>, %arg4: memref<1x4x1xf32, #tpu.memory_space<vmem>>, %arg5: memref<1x1x1x128xf32, #tpu.memory_space<vmem>>) attributes {dimension_semantics = [#tpu.dimension_semantics<parallel>, #tpu.dimension_semantics<parallel>], iteration_bounds = array<i64: 2, 1>, scalar_prefetch = 0 : i64, scratch_operands = 0 : i64, tpu.core_type = #tpu.core_type<tc>, window_params = [{transform_indices = @transform_0, window_bounds = array<i64: 1, 4, 256>}, {transform_indices = @transform_1, window_bounds = array<i64: 1, 1, 256>}, {pipeline_mode = #tpu.pipeline_mode<synchronous>, transform_indices = @transform_2, window_bounds = array<i64: 1, 4, 1>}, {transform_indices = @transform_3, window_bounds = array<i64: 1, 1, 1, 128>}]} {
    %c0 = arith.constant 0 : index
    %c0_0 = arith.constant 0 : index
    %c0_1 = arith.constant 0 : index
    %0 = vector.load %arg2[%c0, %c0_0, %c0_1] : memref<1x4x256xf32, #tpu.memory_space<vmem>>, vector<1x4x256xf32>
    %c0_2 = arith.constant 0 : index
    %c0_3 = arith.constant 0 : index
    %c0_4 = arith.constant 0 : index
    %1 = vector.load %arg3[%c0_2, %c0_3, %c0_4] : memref<1x1x256xi32, #tpu.memory_space<vmem>>, vector<1x1x256xi32>
    %c0_5 = arith.constant 0 : index
    %c0_6 = arith.constant 0 : index
    %c0_7 = arith.constant 0 : index
    %2 = vector.load %arg4[%c0_5, %c0_6, %c0_7] : memref<1x4x1xf32, #tpu.memory_space<vmem>>, vector<1x4x1xf32>
    %cst = arith.constant dense<0xFF800000> : vector<1x256xf32>
    %3 = vector.multi_reduction <maximumf>, %0, %cst [1] : vector<1x4x256xf32> to vector<1x256xf32>
    %4 = vector.shape_cast %3 : vector<1x256xf32> to vector<1x1x256xf32>
    %5 = vector.broadcast %4 : vector<1x1x256xf32> to vector<1x4x256xf32>
    %6 = arith.subf %0, %5 : vector<1x4x256xf32>
    %7 = math.exp %6 : vector<1x4x256xf32>
    %cst_8 = arith.constant dense<0.000000e+00> : vector<1x256xf32>
    %8 = vector.multi_reduction <add>, %7, %cst_8 [1] : vector<1x4x256xf32> to vector<1x256xf32>
    %9 = vector.shape_cast %8 : vector<1x256xf32> to vector<1x1x256xf32>
    %10 = math.log %9 : vector<1x1x256xf32>
    %11 = arith.addf %10, %4 : vector<1x1x256xf32>
    %12 = tpu.iota {dimensions = array<i32: 1>} : vector<1x4x256xi32>
    %13 = vector.broadcast %1 : vector<1x1x256xi32> to vector<1x4x256xi32>
    %14 = arith.cmpi eq, %12, %13 : vector<1x4x256xi32>
    %cst_9 = arith.constant 0.000000e+00 : f32
    %15 = vector.broadcast %cst_9 : f32 to vector<1x4x256xf32>
    %16 = arith.select %14, %0, %15 : vector<1x4x256xi1>, vector<1x4x256xf32>
    %cst_10 = arith.constant dense<0.000000e+00> : vector<1x256xf32>
    %17 = vector.multi_reduction <add>, %16, %cst_10 [1] : vector<1x4x256xf32> to vector<1x256xf32>
    %18 = vector.shape_cast %17 : vector<1x256xf32> to vector<1x1x256xf32>
    %cst_11 = arith.constant 0.000000e+00 : f32
    %19 = vector.shape_cast %2 : vector<1x4x1xf32> to vector<1x4x1xf32>
    %20 = vector.broadcast %19 : vector<1x4x1xf32> to vector<1x4x256xf32>
    %21 = vector.broadcast %cst_11 : f32 to vector<1x4x256xf32>
    %22 = arith.select %14, %20, %21 : vector<1x4x256xi1>, vector<1x4x256xf32>
    %cst_12 = arith.constant dense<0.000000e+00> : vector<1x256xf32>
    %23 = vector.multi_reduction <add>, %22, %cst_12 [1] : vector<1x4x256xf32> to vector<1x256xf32>
    %24 = vector.shape_cast %23 : vector<1x256xf32> to vector<1x1x256xf32>
    %25 = arith.subf %11, %18 : vector<1x1x256xf32>
    %26 = tpu.iota {dimensions = array<i32: 2>} : vector<1x1x256xi32>
    %c256_i32 = arith.constant 256 : i32
    %27 = arith.muli %arg1, %c256_i32 : i32
    %28 = vector.broadcast %27 : i32 to vector<1x1x256xi32>
    %29 = arith.addi %28, %26 : vector<1x1x256xi32>
    %c256_i32_13 = arith.constant 256 : i32
    %30 = vector.broadcast %c256_i32_13 : i32 to vector<1x1x256xi32>
    %31 = arith.cmpi slt, %29, %30 : vector<1x1x256xi32>
    %32 = arith.mulf %25, %24 : vector<1x1x256xf32>
    %cst_14 = arith.constant 0.000000e+00 : f32
    %33 = vector.broadcast %cst_14 : f32 to vector<1x1x256xf32>
    %34 = arith.select %31, %32, %33 : vector<1x1x256xi1>, vector<1x1x256xf32>
    %35 = vector.shape_cast %34 : vector<1x1x256xf32> to vector<1x1x1x256xf32>
    %cst_15 = arith.constant dense<0.000000e+00> : vector<1xf32>
    %36 = vector.multi_reduction <add>, %35, %cst_15 [1, 2, 3] : vector<1x1x1x256xf32> to vector<1xf32>
    %37 = vector.shape_cast %36 : vector<1xf32> to vector<1x1x1x1xf32>
    %38 = vector.extract %37[0, 0, 0, 0] : f32 from vector<1x1x1x1xf32>
    %cst_16 = arith.constant 0.000000e+00 : f32
    %39 = vector.broadcast %cst_16 : f32 to vector<1x1x256xf32>
    %40 = arith.select %31, %24, %39 : vector<1x1x256xi1>, vector<1x1x256xf32>
    %41 = vector.shape_cast %40 : vector<1x1x256xf32> to vector<1x1x1x256xf32>
    %cst_17 = arith.constant dense<0.000000e+00> : vector<1xf32>
    %42 = vector.multi_reduction <add>, %41, %cst_17 [1, 2, 3] : vector<1x1x1x256xf32> to vector<1xf32>
    %43 = vector.shape_cast %42 : vector<1xf32> to vector<1x1x1x1xf32>
    %44 = vector.extract %43[0, 0, 0, 0] : f32 from vector<1x1x1x1xf32>
    %45 = tpu.iota {dimensions = array<i32: 1>} : vector<1x128xi32>
    %c0_i32 = arith.constant 0 : i32
    %46 = vector.broadcast %c0_i32 : i32 to vector<1x128xi32>
    %47 = arith.cmpi eq, %45, %46 : vector<1x128xi32>
    %c1_i32 = arith.constant 1 : i32
    %48 = vector.broadcast %c1_i32 : i32 to vector<1x128xi32>
    %49 = arith.cmpi eq, %45, %48 : vector<1x128xi32>
    %cst_18 = arith.constant 0.000000e+00 : f32
    %50 = vector.broadcast %44 : f32 to vector<1x128xf32>
    %51 = vector.broadcast %cst_18 : f32 to vector<1x128xf32>
    %52 = arith.select %49, %50, %51 : vector<1x128xi1>, vector<1x128xf32>
    %53 = vector.broadcast %38 : f32 to vector<1x128xf32>
    %54 = arith.select %47, %53, %52 : vector<1x128xi1>, vector<1x128xf32>
    %55 = vector.shape_cast %54 : vector<1x128xf32> to vector<1x1x1x128xf32>
    %c0_19 = arith.constant 0 : index
    %c0_20 = arith.constant 0 : index
    %c0_21 = arith.constant 0 : index
    %c0_22 = arith.constant 0 : index
    %56 = vector.load %arg5[%c0_19, %c0_20, %c0_21, %c0_22] : memref<1x1x1x128xf32, #tpu.memory_space<vmem>>, vector<1x1x1x128xf32>
    tpu.vector_store %arg5[%c0_19, %c0_20, %c0_21, %c0_22], %55 {strides = array<i32>} : memref<1x1x1x128xf32, #tpu.memory_space<vmem>>, vector<1x1x1x128xf32>,
    return
  }
  func.func @transform_0(%arg0: i32, %arg1: i32) -> (i32, i32, i32) {
    %c0_i32 = arith.constant 0 : i32
    %c0_i32_0 = arith.constant 0 : i32
    return %arg0, %c0_i32, %arg1 : i32, i32, i32
  }
  func.func @transform_1(%arg0: i32, %arg1: i32) -> (i32, i32, i32) {
    %c0_i32 = arith.constant 0 : i32
    %c0_i32_0 = arith.constant 0 : i32
    return %arg0, %c0_i32, %arg1 : i32, i32, i32
  }
  func.func @transform_2(%arg0: i32, %arg1: i32) -> (i32, i32, i32) {
    %c0_i32 = arith.constant 0 : i32
    %c0_i32_0 = arith.constant 0 : i32
    %c0_i32_1 = arith.constant 0 : i32
    %c0_i32_2 = arith.constant 0 : i32
    return %c0_i32, %c0_i32_0, %c0_i32_1 : i32, i32, i32
  }
  func.func @transform_3(%arg0: i32, %arg1: i32) -> (i32, i32, i32, i32) {
    %c0_i32 = arith.constant 0 : i32
    %c0_i32_0 = arith.constant 0 : i32
    %c0_i32_1 = arith.constant 0 : i32
    return %arg0, %arg1, %c0_i32, %c0_i32_0 : i32, i32, i32, i32
  }
}

</mosaic_0001>

<llo_original>
// kernel: tpu_custom_call.1
$region0: #{tpu_custom_call.1}
  #allocation0 [shape = 'u32[]', space=smem, size = 0x4, offset = 0x4, fixed_abs, tag = 'smem constant byte address 0x4 - core index']
  #allocation1 [shape = 'u32[144,128]{1,0:T(1,128)}', space=vmem, size = 0x12000, scoped, tag = 'internal scratch']
  %s0 = inlined_call_operand.hbm [shape: f32[2,4,256], index: 0, kind: input, shape index: {}]
  %s1 = inlined_call_operand.vmem [shape: s32[2,1,256], index: 1, kind: input, shape index: {}]
  %s2 = inlined_call_operand.vmem [shape: f32[1,4,1], index: 2, kind: input, shape index: {}]
  %s3 = inlined_call_operand.hbm [shape: f32[2,1,1,128], index: 3, kind: output, shape index: {}]
  %s4 = sld [smem:[#allocation0]]
  $region49: #{tpu_custom_call.1} parent=0
    _
  %s6 = ssub.s32 1, %s4
  %s7 = scalar_select 0, %s6, %s4
  $region1: #{tpu_custom_call.1} parent=0
    #allocation2 [shape = 'u8[8192]{0}', space=vmem, size = 0x2000, scoped, tag = 'input window, operand 0']
    #allocation3 [shape = 's32[2]{0}', space=sflag, size = 0x8, scoped, tag = 'scoped memory for tpu_custom_call.1']
    #allocation4 [shape = 's32[2]{0}', space=sflag, size = 0x8, scoped, tag = 'scoped memory for tpu_custom_call.1']
    #allocation5 [shape = 'u8[1024]{0}', space=vmem, size = 0x400, scoped, tag = 'output window, operand 0']
    %8 = vsyncpa [#allocation3], 0
    %s9 = scalar_lea.sflag [#allocation3], 1
    %10 = vsyncpa %s9, 0
    %11 = vsyncpa [#allocation4], 0
    %s12 = scalar_lea.sflag [#allocation4], 1
    %13 = vsyncpa %s12, 0
    loop: start=0, step=1, limit=4
    $region2: #{tpu_custom_call.1} parent=1 // loop_pre_header
      _
    $region3: #{tpu_custom_call.1} parent=1 // loop_header
      %s15 = sphi 0, %s19
      %p16 = scmp.ge.s32.totalorder %s15, 4
      %s22 = sphi 0, %s34
      %s23 = sphi 0, %s30
      %s24 = sphi 0, %s22
      %s25 = sphi 0, %s23
      %s26 = sphi 0, %s24
      %s27 = sphi 0, %s25
      %s39 = sphi 0, %s41
      %s42 = sphi 0, %s39
      %s43 = sphi 0, %s42
      %s59 = sphi 0, %s43
      %s67 = sphi 0, %s69
      %s70 = sphi 0, %s67
      %s71 = sphi 0, %s70
      %s87 = sphi 0, %s71
      %s91 = sphi 0, %s91
      %s93 = sphi 0, %s91
      %s94 = sphi 0, %s93
      %s108 = sphi 0, %s94
      %s116 = sphi 0, %s118
      %s119 = sphi 0, %s116
      %s120 = sphi 0, %s119
      %s136 = sphi 0, %s120
    $region4: #{tpu_custom_call.1} parent=1 // loop_header_branch
      %18 = sbr.rel (%p16) target = $region8
    $region5: #{tpu_custom_call.1} parent=1 // loop_body
      %s20 = ssub.s32 %s15, 1
      %s21 = ssub.s32 %s15, 2
      %s28 = sadd.s32 1, %s23
      %p29 = scmp.ge.s32.totalorder %s28, 1
      %s30 = scalar_select %p29, 0, %s28
      %s31 = sadd.s32 1, %s22
      %s32 = scalar_select %p29, %s31, %s22
      %p33 = scmp.ge.s32.totalorder %s32, 2
      %s34 = scalar_select %p33, 0, %s32
      %s35 = ssub.s32 %s22, %s34
      %s36 = ssub.s32 %s23, %s30
      %s37 = sor.u32 %s35, %s36
      %p38 = scmp.eq.s32.totalorder %s37, 0
      %s40 = sadd.s32 %s39, 1
      %s41 = scalar_select %p38, %s39, %s40
      %p44 = pneg %p38
      %p45 = scmp.eq.s32.totalorder %s15, 1
      %p46 = por %p44, %p45
      %p47 = scmp.ne.s32.totalorder %s39, %s42
      %p48 = scmp.eq.s32.totalorder %s15, 0
      %p49 = por %p47, %p48
      %p50 = scmp.ne.s32.totalorder %s39, %s42
      %p51 = scmp.eq.s32.totalorder %s20, 1
      %p52 = por %p50, %p51
      %p53 = scmp.ne.s32.totalorder %s42, %s43
      %p54 = scmp.eq.s32.totalorder %s20, 0
      %p55 = por %p53, %p54
      %p56 = scmp.ne.s32.totalorder %s42, %s43
      %p57 = scmp.eq.s32.totalorder %s21, 1
      %p58 = por %p56, %p57
      %p60 = scmp.ne.s32.totalorder %s43, %s59
      %p61 = scmp.eq.s32.totalorder %s21, 0
      %p62 = por %p60, %p61
      %s63 = ssub.s32 %s22, %s34
      %s64 = ssub.s32 %s23, %s30
      %s65 = sor.u32 %s63, %s64
      %p66 = scmp.eq.s32.totalorder %s65, 0
      %s68 = sadd.s32 %s67, 1
      %s69 = scalar_select %p66, %s67, %s68
      %p72 = pneg %p66
      %p73 = scmp.eq.s32.totalorder %s15, 1
      %p74 = por %p72, %p73
      %p75 = scmp.ne.s32.totalorder %s67, %s70
      %p76 = scmp.eq.s32.totalorder %s15, 0
      %p77 = por %p75, %p76
      %p78 = scmp.ne.s32.totalorder %s67, %s70
      %p79 = scmp.eq.s32.totalorder %s20, 1
      %p80 = por %p78, %p79
      %p81 = scmp.ne.s32.totalorder %s70, %s71
      %p82 = scmp.eq.s32.totalorder %s20, 0
      %p83 = por %p81, %p82
      %p84 = scmp.ne.s32.totalorder %s70, %s71
      %p85 = scmp.eq.s32.totalorder %s21, 1
      %p86 = por %p84, %p85
      %p88 = scmp.ne.s32.totalorder %s71, %s87
      %p89 = scmp.eq.s32.totalorder %s21, 0
      %p90 = por %p88, %p89
      %s92 = sadd.s32 %s91, 1
      %p95 = scmp.eq.s32.totalorder %s15, 1
      %p96 = scmp.ne.s32.totalorder %s91, %s93
      %p97 = scmp.eq.s32.totalorder %s15, 0
      %p98 = por %p96, %p97
      %p99 = scmp.ne.s32.totalorder %s91, %s93
      %p100 = scmp.eq.s32.totalorder %s20, 1
      %p101 = por %p99, %p100
      %p102 = scmp.ne.s32.totalorder %s93, %s94
      %p103 = scmp.eq.s32.totalorder %s20, 0
      %p104 = por %p102, %p103
      %p105 = scmp.ne.s32.totalorder %s93, %s94
      %p106 = scmp.eq.s32.totalorder %s21, 1
      %p107 = por %p105, %p106
      %p109 = scmp.ne.s32.totalorder %s94, %s108
      %p110 = scmp.eq.s32.totalorder %s21, 0
      %p111 = por %p109, %p110
      %s112 = ssub.s32 %s22, %s34
      %s113 = ssub.s32 %s23, %s30
      %s114 = sor.u32 %s112, %s113
      %p115 = scmp.eq.s32.totalorder %s114, 0
      %s117 = sadd.s32 %s116, 1
      %s118 = scalar_select %p115, %s116, %s117
      %p121 = pneg %p115
      %p122 = scmp.eq.s32.totalorder %s15, 1
      %p123 = por %p121, %p122
      %p124 = scmp.ne.s32.totalorder %s116, %s119
      %p125 = scmp.eq.s32.totalorder %s15, 0
      %p126 = por %p124, %p125
      %p127 = scmp.ne.s32.totalorder %s116, %s119
      %p128 = scmp.eq.s32.totalorder %s20, 1
      %p129 = por %p127, %p128
      %p130 = scmp.ne.s32.totalorder %s119, %s120
      %p131 = scmp.eq.s32.totalorder %s20, 0
      %p132 = por %p130, %p131
      %p133 = scmp.ne.s32.totalorder %s119, %s120
      %p134 = scmp.eq.s32.totalorder %s21, 1
      %p135 = por %p133, %p134
      %p137 = scmp.ne.s32.totalorder %s120, %s136
      %p138 = scmp.eq.s32.totalorder %s21, 0
      %p139 = por %p137, %p138
      %p140 = scmp.le.s32.totalorder 1, %s15
      %p141 = scmp.lt.s32.totalorder %s15, 3
      %p142 = pnand %p140, %p141
      %p143 = pneg %p142
      // Predicated region
      $region9: #{tpu_custom_call.1} parent=5 // pred_check
        _
      $region10: #{tpu_custom_call.1} parent=5 // pred_check_branch
        %145 = sbr.rel (%p142) target = $region12
      $region11: #{tpu_custom_call.1} parent=5 // pred_region
        %s146 = ssub.s32 %s15, 1
        // Predicated region
        $region13: #{tpu_custom_call.1} parent=11 // pred_check
          %p147 = pneg %p104
        $region14: #{tpu_custom_call.1} parent=11 // pred_check_branch
          %149 = sbr.rel (%p147) target = $region16
        $region15: #{tpu_custom_call.1} parent=11 // pred_region
          _
        $region16: #{tpu_custom_call.1} parent=11 // pred_fallthru
          _
      $region12: #{tpu_custom_call.1} parent=5 // pred_fallthru
        _
      %p150 = scmp.lt.s32.totalorder %s15, 2
      // Predicated region
      $region17: #{tpu_custom_call.1} parent=5 // pred_check
        %p151 = pneg %p150
      $region18: #{tpu_custom_call.1} parent=5 // pred_check_branch
        %153 = sbr.rel (%p151) target = $region20
      $region19: #{tpu_custom_call.1} parent=5 // pred_region
        // Predicated region
        $region21: #{tpu_custom_call.1} parent=19 // pred_check
          %p154 = pneg %p49
        $region22: #{tpu_custom_call.1} parent=19 // pred_check_branch
          %156 = sbr.rel (%p154) target = $region24
        $region23: #{tpu_custom_call.1} parent=19 // pred_region
          %s157 = sand.u32 %s39, 1
          %s158 = scalar_lea.sflag [#allocation3], %s157
          %s159 = sand.u32 %s39, 1
          %s160 = smul.addr %s159, 8
          %s161 = scalar_lea.vmem [#allocation2], %s160
          %s162 = smul.u32 2, %s23
          %s164 = ssub.s32 128, 128
          %165 = vsyncadd %s158, %s164
          %s166 = smul.addr %s22, 2
          %s167 = sadd.s32 %s162, %s166
          %s168 = smul.addr %s167, 64
          %s169 = scalar_lea.hbm %s0, %s168
          %s171 = sshll.u32 %s161, 4
          %s172 = int_to_ptr.vmem [resolvable:$true] %s171
          %174 = dma.hbm_to_vmem [thread:$0]  %s169, 128, %s172, %s158
        $region24: #{tpu_custom_call.1} parent=19 // pred_fallthru
          _
        // Predicated region
        $region25: #{tpu_custom_call.1} parent=19 // pred_check
          %p175 = pneg %p77
        $region26: #{tpu_custom_call.1} parent=19 // pred_check_branch
          %177 = sbr.rel (%p175) target = $region28
        $region27: #{tpu_custom_call.1} parent=19 // pred_region
          %s178 = smul.u32 2, %s23
          %p179 = scmp.lt.s32.totalorder %s22, 1
          %s180 = scalar_select %p179, %s22, 1
          %p181 = scmp.lt.s32.totalorder %s178, 1
          %s182 = scalar_select %p181, %s178, 1
          %s183 = smul.addr %s180, 2
          %s184 = sadd.s32 %s182, %s183
          %s185 = scalar_lea.vmem %s1, %s184
          %s186 = smul.u32 2, %s23
        $region28: #{tpu_custom_call.1} parent=19 // pred_fallthru
          _
      $region20: #{tpu_custom_call.1} parent=5 // pred_fallthru
        _
      %p187 = scmp.le.s32.totalorder 1, %s15
      %p188 = scmp.lt.s32.totalorder %s15, 3
      %p189 = pnand %p187, %p188
      %p190 = pneg %p189
      // Predicated region
      $region29: #{tpu_custom_call.1} parent=5 // pred_check
        _
      $region30: #{tpu_custom_call.1} parent=5 // pred_check_branch
        %192 = sbr.rel (%p189) target = $region32
      $region31: #{tpu_custom_call.1} parent=5 // pred_region
        %s193 = ssub.s32 %s15, 1
        %s194 = sand.u32 %s42, 1
        %s195 = scalar_lea.sflag [#allocation3], %s194
        %s196 = sand.u32 %s42, 1
        %s197 = smul.addr %s196, 8
        %s198 = scalar_lea.vmem [#allocation2], %s197
        // Predicated region
        $region33: #{tpu_custom_call.1} parent=31 // pred_check
          %p199 = pneg %p55
        $region34: #{tpu_custom_call.1} parent=31 // pred_check_branch
          %201 = sbr.rel (%p199) target = $region36
        $region35: #{tpu_custom_call.1} parent=31 // pred_region
          %202 = dma.done %s195, 128
        $region36: #{tpu_custom_call.1} parent=31 // pred_fallthru
          _
        %s203 = sand.u32 %s42, 1
        %s204 = scalar_lea.sflag [#allocation3], %s203
        %s205 = sand.u32 %s42, 1
        %s206 = smul.addr %s205, 8
        %s207 = scalar_lea.vmem [#allocation2], %s206
        %p208 = pneg %p55
        %p209 = pneg %p52
        %s210 = smul.u32 2, %s25
        %p211 = scmp.lt.s32.totalorder %s24, 1
        %s212 = scalar_select %p211, %s24, 1
        %p213 = scmp.lt.s32.totalorder %s210, 1
        %s214 = scalar_select %p213, %s210, 1
        %s215 = smul.addr %s212, 2
        %s216 = sadd.s32 %s214, %s215
        %s217 = scalar_lea.vmem %s1, %s216
        %p218 = pneg %p83
        %p219 = pneg %p80
        %p220 = pneg %p104
        %p221 = pneg %p101
        %p222 = pneg %p132
        %p223 = pneg %p129
        %s224 = sand.u32 %s119, 1
        %s225 = scalar_lea.sflag [#allocation4], %s224
        %s226 = sand.u32 %s119, 1
        %s227 = scalar_lea.vmem [#allocation5], %s226
        %s228 = smul.u32 2, %s25
        %s229 = smul.u32 2, %s25
        %p230 = scmp.lt.s32.totalorder %s24, 1
        %s231 = scalar_select %p230, %s24, 1
        %p232 = scmp.lt.s32.totalorder %s229, 1
        %s233 = scalar_select %p232, %s229, 1
        %s234 = smul.addr %s231, 2
        %s235 = sadd.s32 %s233, %s234
        %s236 = scalar_lea.vmem %s1, %s235
        %s237 = smul.u32 2, %s25
        %v238 = vld [vmem:[%s198] sm:$0xff]
        %v239 = vld [vmem:[%s236] sm:$0x3]
        %v240 = vld [vmem:[%s2] sm:$0xf]
        %v242 = vcombine.high %v238, %v238
        %vm244 = vcmask 1043456
        %v245 = vsel %vm244, %v238, -inf
        %v246 = vrot.slane %v245, 4
        %v247 = vmax.f32 %v245, %v246
        %v248 = vrot.slane %v247, 2
        %v249 = vmax.f32 %v247, %v248
        %v250 = vrot.slane %v249, 1
        %v251 = vmax.f32 %v249, %v250
        %v252 = vsel %vm244, %v242, -inf
        %v253 = vrot.slane %v252, 4
        %v254 = vmax.f32 %v252, %v253
        %v255 = vrot.slane %v254, 2
        %v256 = vmax.f32 %v254, %v255
        %v257 = vrot.slane %v256, 1
        %v258 = vmax.f32 %v256, %v257
        %v261 = vcombine.low %v251, %v258
        %v263 = vsub.f32 %v238, %v261
        %v264 = vmul.f32 %v263, 1.442695
        %v265 = vpow.pop %v264
        %v267 = vcombine.high %v265, %v265
        %v269 = vsel %vm244, %v265, 0.0
        %v270 = vrot.slane %v269, 4
        %v271 = vadd.f32 %v269, %v270
        %v272 = vrot.slane %v271, 2
        %v273 = vadd.f32 %v271, %v272
        %v274 = vrot.slane %v273, 1
        %v275 = vadd.f32 %v273, %v274
        %v276 = vsel %vm244, %v267, 0.0
        %v277 = vrot.slane %v276, 4
        %v278 = vadd.f32 %v276, %v277
        %v279 = vrot.slane %v278, 2
        %v280 = vadd.f32 %v278, %v279
        %v281 = vrot.slane %v280, 1
        %v282 = vadd.f32 %v280, %v281
        %v283 = vlog2.pop %v275
        %v284 = vmul.f32 %v283, 0.6931472
        %v285 = vlog2.pop %v282
        %v286 = vmul.f32 %v285, 0.6931472
        %v287 = vadd.f32 %v284, %v251
        %v288 = vadd.f32 %v286, %v258
        %v289 = vlaneseq
        %v290 = vshrl.u32 %v289, 7
        %v291 = vlaneseq
        %v292 = vshrl.u32 %v291, 7
        %v293 = vsub.s32 0, %v292
        %v294 = vrot.slane %v239, %v293
        %v295 = vlaneseq
        %v296 = vshrl.u32 %v295, 7
        %v297 = vsub.s32 1, %v296
        %v298 = vrot.slane %v239, %v297
        %vm299 = vcmp.eq.s32.totalorder %v290, %v294
        %vm300 = vcmp.eq.s32.totalorder %v290, %v298
        %v301 = vsel %vm299, %v238, 0.0
        %v302 = vsel %vm300, %v242, 0.0
        %v303 = vsel %vm244, %v301, 0.0
        %v304 = vrot.slane %v303, 4
        %v305 = vadd.f32 %v303, %v304
        %v306 = vrot.slane %v305, 2
        %v307 = vadd.f32 %v305, %v306
        %v308 = vrot.slane %v307, 1
        %v309 = vadd.f32 %v307, %v308
        %v310 = vsel %vm244, %v302, 0.0
        %v311 = vrot.slane %v310, 4
        %v312 = vadd.f32 %v310, %v311
        %v313 = vrot.slane %v312, 2
        %v314 = vadd.f32 %v312, %v313
        %v315 = vrot.slane %v314, 1
        %v316 = vadd.f32 %v314, %v315
        %318 = vset.pattern.permute.xlu0 0
        %319 = vperm.xlu0 %318, %v240
        %v320 = vpop.permute.xlu0 %319
        %v322 = vsel %vm299, %v320, 0.0
        %v323 = vsel %vm300, %v320, 0.0
        %v324 = vsel %vm244, %v322, 0.0
        %v325 = vrot.slane %v324, 4
        %v326 = vadd.f32 %v324, %v325
        %v327 = vrot.slane %v326, 2
        %v328 = vadd.f32 %v326, %v327
        %v329 = vrot.slane %v328, 1
        %v330 = vadd.f32 %v328, %v329
        %v331 = vsel %vm244, %v323, 0.0
        %v332 = vrot.slane %v331, 4
        %v333 = vadd.f32 %v331, %v332
        %v334 = vrot.slane %v333, 2
        %v335 = vadd.f32 %v333, %v334
        %v336 = vrot.slane %v335, 1
        %v337 = vadd.f32 %v335, %v336
        %v338 = vsub.f32 %v287, %v309
        %v339 = vsub.f32 %v288, %v316
        %v340 = vlaneseq
        %v341 = vand.u32 %v340, 127
        %v342 = vadd.s32 %v341, 128
        %s343 = smul.u32 %s25, 256
        %v344 = vstv %s343
        %v345 = vadd.s32 %v344, %v341
        %v346 = vadd.s32 %v344, %v342
        %vm347 = vcmp.lt.s32.totalorder %v345, 256
        %vm348 = vcmp.lt.s32.totalorder %v346, 256
        %v349 = vmul.f32 %v338, %v330
        %v350 = vmul.f32 %v339, %v337
        %v351 = vsel %vm347, %v349, 0.0
        %v352 = vsel %vm348, %v350, 0.0
        %vm353 = vcmask 1040384
        %v354 = vsel %vm353, %v351, 0.0
        %v355 = vsel %vm353, %v352, 0.0
        %v356 = vadd.f32 %v354, %v355
        %357 = vadd.xlane.f32.xlu0 %v356
        %v358 = vpop.xlane.xlu0 %357
        %v359 = vrot.slane %v358, 4
        %v360 = vadd.f32 %v358, %v359
        %v361 = vrot.slane %v360, 2
        %v362 = vadd.f32 %v360, %v361
        %v363 = vrot.slane %v362, 1
        %v364 = vadd.f32 %v362, %v363
        %s365 = vtos %v364
        %v366 = vsel %vm347, %v330, 0.0
        %v367 = vsel %vm348, %v337, 0.0
        %v368 = vsel %vm353, %v366, 0.0
        %v369 = vsel %vm353, %v367, 0.0
        %v370 = vadd.f32 %v368, %v369
        %371 = vadd.xlane.f32.xlu0 %v370
        %v372 = vpop.xlane.xlu0 %371
        %v373 = vrot.slane %v372, 4
        %v374 = vadd.f32 %v372, %v373
        %v375 = vrot.slane %v374, 2
        %v376 = vadd.f32 %v374, %v375
        %v377 = vrot.slane %v376, 1
        %v378 = vadd.f32 %v376, %v377
        %s379 = vtos %v378
        %vm380 = vcmp.eq.s32.totalorder %v341, 0
        %vm381 = vcmp.eq.s32.totalorder %v341, 1
        %v382 = vstv %s379
        %v383 = vsel %vm381, %v382, 0.0
        %v384 = vstv %s365
        %v385 = vsel %vm380, %v384, %v383
        %386 = vst [vmem:[%s227] sm:$0x1] %v385
        %s387 = sand.u32 %s119, 1
        %s388 = scalar_lea.sflag [#allocation4], %s387
        %s389 = sand.u32 %s119, 1
        %s390 = scalar_lea.vmem [#allocation5], %s389
        // Predicated region
        $region37: #{tpu_custom_call.1} parent=31 // pred_check
          %p391 = pneg %p129
        $region38: #{tpu_custom_call.1} parent=31 // pred_check_branch
          %393 = sbr.rel (%p391) target = $region40
        $region39: #{tpu_custom_call.1} parent=31 // pred_region
          %s395 = ssub.s32 16, 16
          %396 = vsyncadd %s388, %s395
          %s397 = sadd.s32 %s25, %s24
          %s398 = smul.addr %s397, 16
          %s399 = scalar_lea.hbm %s3, %s398
          %s401 = sshll.u32 %s390, 4
          %s402 = int_to_ptr.vmem [resolvable:$true] %s401
          %404 = dma.vmem_to_hbm [thread:$0]  %s402, 16, %s399, %s388
        $region40: #{tpu_custom_call.1} parent=31 // pred_fallthru
          _
      $region32: #{tpu_custom_call.1} parent=5 // pred_fallthru
        _
      %p405 = scmp.le.s32.totalorder 2, %s15
      // Predicated region
      $region41: #{tpu_custom_call.1} parent=5 // pred_check
        %p406 = pneg %p405
      $region42: #{tpu_custom_call.1} parent=5 // pred_check_branch
        %408 = sbr.rel (%p406) target = $region44
      $region43: #{tpu_custom_call.1} parent=5 // pred_region
        %s409 = ssub.s32 %s15, 2
        // Predicated region
        $region45: #{tpu_custom_call.1} parent=43 // pred_check
          %p410 = pneg %p135
        $region46: #{tpu_custom_call.1} parent=43 // pred_check_branch
          %412 = sbr.rel (%p410) target = $region48
        $region47: #{tpu_custom_call.1} parent=43 // pred_region
          %s413 = sand.u32 %s120, 1
          %s414 = scalar_lea.sflag [#allocation4], %s413
          %s415 = sand.u32 %s120, 1
          %s416 = scalar_lea.vmem [#allocation5], %s415
          %417 = dma.done %s414, 16
        $region48: #{tpu_custom_call.1} parent=43 // pred_fallthru
          _
      $region44: #{tpu_custom_call.1} parent=5 // pred_fallthru
        _
    $region6: #{tpu_custom_call.1} parent=1 // loop_footer
      %s19 = sadd.s32 1, %s15
    $region7: #{tpu_custom_call.1} parent=1 // loop_footer_branch
      %14 = sbr.rel target = $region3
    $region8: #{tpu_custom_call.1} parent=1 // loop_exit
      _
    %418 = vsyncpa [#allocation3], 1
    %s419 = scalar_lea.sflag [#allocation3], 1
    %420 = vsyncpa %s419, 1
    %421 = vsyncpa [#allocation4], 1
    %s422 = scalar_lea.sflag [#allocation4], 1
    %423 = vsyncpa %s422, 1

</llo_original>
